<compile_context>
chip_gen: v7x
topology: tpu7x:2x2x1
jax: 0.10.0
libtpu: 0.0.40
codegen_flags: <defaults>
</compile_context>

<pallas_src>
import functools

import jax
import jax.numpy as jnp
from jax import lax
from jax.experimental import pallas as pl
from jax.experimental.pallas import tpu as pltpu


def _round_up(x, m):
    return (x + m - 1) // m * m


def _device_kind():
    try:
        return jax.devices()[0].device_kind.lower()
    except Exception:
        return ""


def _device_vmem_bytes():
    try:
        return int(pltpu.get_tpu_info().vmem_capacity_bytes)
    except Exception:
        return 64 * 1024 * 1024  # conservative: v7x per-TensorCore VMEM


def _pick_row_tile(Ho, Wo, target_rows):
    """Smallest divisor of Ho whose tile gives the MXU >= target_rows LHS rows,
    preferring >= 2 row tiles (grid points for megacore) when possible."""
    divs = [d for d in range(1, Ho + 1) if Ho % d == 0]
    for th in divs:
        if th * Wo >= target_rows and Ho // th >= 2:
            return th
    for th in divs:
        if th * Wo >= target_rows:
            return th
    return Ho


def _bspec(shape, index_map, *, buffers=None):
    """BlockSpec, optionally with an explicit pipeline buffer count.
    buffers=1 single-buffers grid-invariant operands (VMEM savings)."""
    if buffers is not None and hasattr(pl, "Buffered"):
        try:
            return pl.BlockSpec(shape, index_map, pipeline_mode=pl.Buffered(buffers))
        except TypeError:  # older jax without pipeline_mode: fall back to default
            pass
    return pl.BlockSpec(shape, index_map)


def _block_kernel(*refs, stride, TH, Wo, Cp_in, Cp_out):
    # refs = [x_plane_0 .. x_plane_{stride^2-1}, dw, b1, pw, b2, out]
    #   x_plane : (1, Hq, Wq, Cp_in)  parity plane of the padded NHWC image, f32
    #   dw      : (9, Cp_in)          depthwise 3x3 taps * BN1 scale, f32
    #   b1      : (1, Cp_in)          folded BN1 bias, f32
    #   pw      : (Cp_in, Cp_out)     pointwise weights * BN2 scale, bf16
    #   b2      : (1, Cp_out)         folded BN2 bias, f32
    #   out     : (1, TH, Wo, Cp_out) one row tile of the output
    n_planes = stride * stride
    x_planes = refs[:n_planes]
    dw_ref, b1_ref, pw_ref, b2_ref, out_ref = refs[n_planes:]

    t = pl.program_id(1)
    row0 = t * TH
    if TH % 8 == 0:
        row0 = pl.multiple_of(row0, 8)  # sublane-aligned dynamic slice hint

    # Per-tap weight views (BN1 scale already folded in by the wrapper).
    dww = dw_ref[...].reshape(9, 1, 1, Cp_in)

    # ---- one halo row-slab load per parity plane, reused by all 9 taps ----
    # stride=1 -> 1 load of (TH+2, Wq, C); stride=2 -> 4 smaller loads.
    slabs = {}
    for hp in range(stride):
        hqs = [kh // stride for kh in range(3) if kh % stride == hp]
        if not hqs:
            continue
        nrows = TH + max(hqs)
        for wp in range(stride):
            if any(kw % stride == wp for kw in range(3)):
                slabs[(hp, wp)] = x_planes[hp * stride + wp][0, pl.ds(row0, nrows), :, :]

    # ---- depthwise 3x3 conv: 9 dense VPU MAC sweeps on in-register slices ----
    acc = None
    for kh in range(3):
        hp, hq = kh % stride, kh // stride
        for kw in range(3):
            wp, wq = kw % stride, kw // stride
            patch = slabs[(hp, wp)][hq:hq + TH, wq:wq + Wo, :]
            term = patch * dww[kh * 3 + kw]
            acc = term if acc is None else acc + term

    # ---- BN1 bias + ReLU (scale folded into dw taps) ----
    y = jnp.maximum(acc + b1_ref[...].reshape(1, 1, Cp_in), 0.0)   # (TH, Wo, Cp_in)

    # ---- pointwise 1x1 conv (bf16 MXU, f32 accum) + BN2 bias + ReLU ----
    if Wo % 8 == 0:
        # The flatten stays inside (8,128) sublane tiles -> free reshape.
        y2 = jnp.dot(y.reshape(TH * Wo, Cp_in).astype(jnp.bfloat16), pw_ref[...],
                     preferred_element_type=jnp.float32)           # (TH*Wo, Cp_out)
        out = jnp.maximum(y2 + b2_ref[...], 0.0)
        out_ref[0] = out.reshape(TH, Wo, Cp_out)
    else:
        # Avoid the relayout a non-8-aligned flatten would force.
        y2 = lax.dot_general(y.astype(jnp.bfloat16), pw_ref[...],
                             (((2,), (0,)), ((), ())),
                             preferred_element_type=jnp.float32)   # (TH, Wo, Cp_out)
        out_ref[0] = jnp.maximum(y2 + b2_ref[...].reshape(1, 1, Cp_out), 0.0)


def mobilenet_block(x_nchw, dw_w, pw_w, bn1, bn2, *, stride=1, eps=1e-5):
    """x_nchw: (N, Cin, H, W); dw_w: (Cin, 1, 3, 3); pw_w: (Cout, Cin, 1, 1);
    bn1/bn2: (gamma, beta, running_mean, running_var). Returns NCHW output."""
    N, Cin, H, W = x_nchw.shape
    Cout = pw_w.shape[0]
    Ho = (H + 2 - 3) // stride + 1
    Wo = (W + 2 - 3) // stride + 1

    # Lane-dense channel padding (128-lane vregs, unmasked stores).
    Cp_in = _round_up(Cin, 128)
    Cp_out = _round_up(Cout, 128)

    # Parity-plane decomposition so in-kernel loads are never sublane-strided.
    Hq = -(-(H + 2) // stride)
    Wq = -(-(W + 2) // stride)

    # NOTE: NHWC transposes kept only to honor the PyTorch NCHW interface.
    x = jnp.transpose(x_nchw, (0, 2, 3, 1)).astype(jnp.float32)      # NHWC
    xpad = jnp.pad(x, ((0, 0),
                       (1, Hq * stride - H - 1),
                       (1, Wq * stride - W - 1),
                       (0, Cp_in - Cin)))
    planes = [xpad[:, hp::stride, wp::stride, :]
              for hp in range(stride) for wp in range(stride)]        # (N,Hq,Wq,Cp_in)

    # ---- fold BN scales into the conv weights, keep only biases for the kernel ----
    g1, be1, m1, v1 = bn1
    s1 = (g1 / jnp.sqrt(v1 + eps)).astype(jnp.float32)               # (Cin,)
    bias1 = (be1 - m1 * s1).astype(jnp.float32)
    g2, be2, m2, v2 = bn2
    s2 = (g2 / jnp.sqrt(v2 + eps)).astype(jnp.float32)               # (Cout,)
    bias2 = (be2 - m2 * s2).astype(jnp.float32)

    dww = jnp.transpose(dw_w[:, 0], (1, 2, 0)).reshape(9, Cin).astype(jnp.float32)
    dww = jnp.pad(dww * s1[None, :], ((0, 0), (0, Cp_in - Cin)))      # (9, Cp_in)
    pww = jnp.transpose(pw_w[:, :, 0, 0], (1, 0)).astype(jnp.float32) * s2[None, :]
    pww = jnp.pad(pww, ((0, Cp_in - Cin), (0, Cp_out - Cout))).astype(jnp.bfloat16)

    b1 = jnp.pad(bias1, (0, Cp_in - Cin)).reshape(1, Cp_in)
    b2 = jnp.pad(bias2, (0, Cp_out - Cout)).reshape(1, Cp_out)

    # Device-aware row tiling: fill a 128x128 MXU on v5-class chips, 256 rows on v6e/v7x.
    kind = _device_kind()
    target_rows = 256 if ("v6" in kind or "v7" in kind) else 128
    TH = _pick_row_tile(Ho, Wo, target_rows)
    n_tiles = Ho // TH

    kernel = functools.partial(_block_kernel, stride=stride, TH=TH, Wo=Wo,
                               Cp_in=Cp_in, Cp_out=Cp_out)

    # Working-set estimate -> scoped VMEM limit, capped by the real device VMEM.
    est = (2 * stride * stride * Hq * Wq * Cp_in * 4       # input planes (dbl buf)
           + 2 * TH * Wo * Cp_out * 4                       # output tile (dbl buf)
           + 10 * Cp_in * 4 + Cp_in * Cp_out * 2 + Cp_out * 4   # single-buffered weights
           + (TH + 2) * Wq * Cp_in * 4                      # live halo slab(s)
           + TH * Wo * (Cp_in + Cp_out) * 4)                # live intermediates
    vmem_cap = _device_vmem_bytes()
    vmem_limit = int(min(max(2 * est, 32 * 1024 * 1024), int(0.75 * vmem_cap)))

    plane_specs = [_bspec((1, Hq, Wq, Cp_in), lambda n, t: (n, 0, 0, 0))
                   for _ in range(stride * stride)]
    weight_specs = [
        _bspec((9, Cp_in), lambda n, t: (0, 0), buffers=1),
        _bspec((1, Cp_in), lambda n, t: (0, 0), buffers=1),
        _bspec((Cp_in, Cp_out), lambda n, t: (0, 0), buffers=1),
        _bspec((1, Cp_out), lambda n, t: (0, 0), buffers=1),
    ]

    out_nhwc = pl.pallas_call(
        kernel,
        out_shape=jax.ShapeDtypeStruct((N, Ho, Wo, Cp_out), jnp.float32),
        grid_spec=pltpu.PrefetchScalarGridSpec(
            num_scalar_prefetch=0,
            grid=(N, n_tiles),
            in_specs=plane_specs + weight_specs,
            out_specs=pl.BlockSpec((1, TH, Wo, Cp_out), lambda n, t: (n, t, 0, 0)),
        ),
        compiler_params=pltpu.CompilerParams(
            dimension_semantics=("parallel", "parallel"),
            vmem_limit_bytes=vmem_limit),
    )(*planes, dww, b1, pww, b2)

    out_nhwc = out_nhwc[:, :, :, :Cout]
    return jnp.transpose(out_nhwc, (0, 3, 1, 2))  # back to NCHW


def _reference(x, dw_w, pw_w, bn1, bn2, *, stride=1, eps=1e-5):
    def bn_relu(y, bn):
        g, b, m, v = bn
        y = (y - m[None, :, None, None]) / jnp.sqrt(v + eps)[None, :, None, None]
        return jax.nn.relu(y * g[None, :, None, None] + b[None, :, None, None])

    y = lax.conv_general_dilated(x, dw_w, (stride, stride), ((1, 1), (1, 1)),
                                 dimension_numbers=('NCHW', 'OIHW', 'NCHW'),
                                 feature_group_count=x.shape[1])
    y = bn_relu(y, bn1)
    y = lax.conv_general_dilated(y, pw_w, (1, 1), ((0, 0), (0, 0)),
                                 dimension_numbers=('NCHW', 'OIHW', 'NCHW'))
    return bn_relu(y, bn2)


if __name__ == "__main__":
    N, Cin, Cout, H, W, stride = 2, 8, 16, 16, 16, 1

    key = jax.random.PRNGKey(0)
    k = jax.random.split(key, 10)
    x = jax.random.normal(k[0], (N, Cin, H, W), jnp.float32)
    dw_w = jax.random.normal(k[1], (Cin, 1, 3, 3), jnp.float32) * 0.2
    pw_w = jax.random.normal(k[2], (Cout, Cin, 1, 1), jnp.float32) * 0.2
    bn1 = (jax.random.uniform(k[3], (Cin,), minval=0.5, maxval=1.5),
           jax.random.normal(k[4], (Cin,)) * 0.1,
           jax.random.normal(k[5], (Cin,)) * 0.1,
           jax.random.uniform(k[6], (Cin,), minval=0.5, maxval=1.5))
    bn2 = (jax.random.uniform(k[7], (Cout,), minval=0.5, maxval=1.5),
           jax.random.normal(k[8], (Cout,)) * 0.1,
           jax.random.normal(k[9], (Cout,)) * 0.1,
           jnp.linspace(0.5, 1.5, Cout, dtype=jnp.float32))

    fn = jax.jit(functools.partial(mobilenet_block, stride=stride))
    out = jax.block_until_ready(fn(x, dw_w, pw_w, bn1, bn2))

    ref = _reference(x, dw_w, pw_w, bn1, bn2, stride=stride)
    assert out.shape == (N, Cout, H // stride, W // stride)
    # bf16 operands on the MXU -> loosened max tolerance; mean error stays tight.
    err = jnp.abs(out - ref)
    assert bool(jnp.all(err <= 5e-2 + 5e-2 * jnp.abs(ref))), "mismatch vs reference"
    assert float(jnp.mean(err)) < 5e-3, "mean error vs reference too large"

    print("KERNEL_OK")
</pallas_src>

<mosaic_0001>
module attributes {stable_mosaic.version = 11 : i64} {
  func.func @_block_kernel(%arg0: i32, %arg1: i32, %arg2: memref<1x18x18x128xf32, #tpu.memory_space<vmem>>, %arg3: memref<9x128xf32, #tpu.memory_space<vmem>>, %arg4: memref<1x128xf32, #tpu.memory_space<vmem>>, %arg5: memref<128x128xbf16, #tpu.memory_space<vmem>>, %arg6: memref<1x128xf32, #tpu.memory_space<vmem>>, %arg7: memref<1x8x16x128xf32, #tpu.memory_space<vmem>>) attributes {dimension_semantics = [#tpu.dimension_semantics<parallel>, #tpu.dimension_semantics<parallel>], iteration_bounds = array<i64: 2, 2>, scalar_prefetch = 0 : i64, scratch_operands = 0 : i64, tpu.core_type = #tpu.core_type<tc>, window_params = [{transform_indices = @transform_0, window_bounds = array<i64: 1, 18, 18, 128>}, {pipeline_mode = #tpu.pipeline_mode<synchronous>, transform_indices = @transform_1, window_bounds = array<i64: 9, 128>}, {pipeline_mode = #tpu.pipeline_mode<synchronous>, transform_indices = @transform_2, window_bounds = array<i64: 1, 128>}, {pipeline_mode = #tpu.pipeline_mode<synchronous>, transform_indices = @transform_3, window_bounds = array<i64: 128, 128>}, {pipeline_mode = #tpu.pipeline_mode<synchronous>, transform_indices = @transform_4, window_bounds = array<i64: 1, 128>}, {transform_indices = @transform_5, window_bounds = array<i64: 1, 8, 16, 128>}]} {
    %c8_i32 = arith.constant 8 : i32
    %0 = arith.muli %arg1, %c8_i32 : i32
    %1 = tpu.assume_multiple %0, 8 : i32
    %c0 = arith.constant 0 : index
    %c0_0 = arith.constant 0 : index
    %2 = vector.load %arg3[%c0, %c0_0] : memref<9x128xf32, #tpu.memory_space<vmem>>, vector<9x128xf32>
    %3 = vector.shape_cast %2 : vector<9x128xf32> to vector<9x1x1x128xf32>
    %c0_1 = arith.constant 0 : index
    %4 = arith.index_cast %1 : i32 to index
    %c0_2 = arith.constant 0 : index
    %c0_3 = arith.constant 0 : index
    %5 = vector.load %arg2[%c0_1, %4, %c0_2, %c0_3] : memref<1x18x18x128xf32, #tpu.memory_space<vmem>>, vector<1x10x18x128xf32>
    %6 = vector.shape_cast %5 : vector<1x10x18x128xf32> to vector<10x18x128xf32>
    %7 = vector.extract_strided_slice %6 {offsets = [0, 0, 0], sizes = [8, 16, 128], strides = [1, 1, 1]} : vector<10x18x128xf32> to vector<8x16x128xf32>
    %8 = vector.extract_strided_slice %3 {offsets = [0, 0, 0, 0], sizes = [1, 1, 1, 128], strides = [1, 1, 1, 1]} : vector<9x1x1x128xf32> to vector<1x1x1x128xf32>
    %9 = vector.shape_cast %8 : vector<1x1x1x128xf32> to vector<1x1x128xf32>
    %10 = vector.broadcast %9 : vector<1x1x128xf32> to vector<8x16x128xf32>
    %11 = arith.mulf %7, %10 : vector<8x16x128xf32>
    %12 = vector.extract_strided_slice %6 {offsets = [0, 1, 0], sizes = [8, 16, 128], strides = [1, 1, 1]} : vector<10x18x128xf32> to vector<8x16x128xf32>
    %13 = vector.extract_strided_slice %3 {offsets = [1, 0, 0, 0], sizes = [1, 1, 1, 128], strides = [1, 1, 1, 1]} : vector<9x1x1x128xf32> to vector<1x1x1x128xf32>
    %14 = vector.shape_cast %13 : vector<1x1x1x128xf32> to vector<1x1x128xf32>
    %15 = vector.broadcast %14 : vector<1x1x128xf32> to vector<8x16x128xf32>
    %16 = arith.mulf %12, %15 : vector<8x16x128xf32>
    %17 = arith.addf %11, %16 : vector<8x16x128xf32>
    %18 = vector.extract_strided_slice %6 {offsets = [0, 2, 0], sizes = [8, 16, 128], strides = [1, 1, 1]} : vector<10x18x128xf32> to vector<8x16x128xf32>
    %19 = vector.extract_strided_slice %3 {offsets = [2, 0, 0, 0], sizes = [1, 1, 1, 128], strides = [1, 1, 1, 1]} : vector<9x1x1x128xf32> to vector<1x1x1x128xf32>
    %20 = vector.shape_cast %19 : vector<1x1x1x128xf32> to vector<1x1x128xf32>
    %21 = vector.broadcast %20 : vector<1x1x128xf32> to vector<8x16x128xf32>
    %22 = arith.mulf %18, %21 : vector<8x16x128xf32>
    %23 = arith.addf %17, %22 : vector<8x16x128xf32>
    %24 = vector.extract_strided_slice %6 {offsets = [1, 0, 0], sizes = [8, 16, 128], strides = [1, 1, 1]} : vector<10x18x128xf32> to vector<8x16x128xf32>
    %25 = vector.extract_strided_slice %3 {offsets = [3, 0, 0, 0], sizes = [1, 1, 1, 128], strides = [1, 1, 1, 1]} : vector<9x1x1x128xf32> to vector<1x1x1x128xf32>
    %26 = vector.shape_cast %25 : vector<1x1x1x128xf32> to vector<1x1x128xf32>
    %27 = vector.broadcast %26 : vector<1x1x128xf32> to vector<8x16x128xf32>
    %28 = arith.mulf %24, %27 : vector<8x16x128xf32>
    %29 = arith.addf %23, %28 : vector<8x16x128xf32>
    %30 = vector.extract_strided_slice %6 {offsets = [1, 1, 0], sizes = [8, 16, 128], strides = [1, 1, 1]} : vector<10x18x128xf32> to vector<8x16x128xf32>
    %31 = vector.extract_strided_slice %3 {offsets = [4, 0, 0, 0], sizes = [1, 1, 1, 128], strides = [1, 1, 1, 1]} : vector<9x1x1x128xf32> to vector<1x1x1x128xf32>
    %32 = vector.shape_cast %31 : vector<1x1x1x128xf32> to vector<1x1x128xf32>
    %33 = vector.broadcast %32 : vector<1x1x128xf32> to vector<8x16x128xf32>
    %34 = arith.mulf %30, %33 : vector<8x16x128xf32>
    %35 = arith.addf %29, %34 : vector<8x16x128xf32>
    %36 = vector.extract_strided_slice %6 {offsets = [1, 2, 0], sizes = [8, 16, 128], strides = [1, 1, 1]} : vector<10x18x128xf32> to vector<8x16x128xf32>
    %37 = vector.extract_strided_slice %3 {offsets = [5, 0, 0, 0], sizes = [1, 1, 1, 128], strides = [1, 1, 1, 1]} : vector<9x1x1x128xf32> to vector<1x1x1x128xf32>
    %38 = vector.shape_cast %37 : vector<1x1x1x128xf32> to vector<1x1x128xf32>
    %39 = vector.broadcast %38 : vector<1x1x128xf32> to vector<8x16x128xf32>
    %40 = arith.mulf %36, %39 : vector<8x16x128xf32>
    %41 = arith.addf %35, %40 : vector<8x16x128xf32>
    %42 = vector.extract_strided_slice %6 {offsets = [2, 0, 0], sizes = [8, 16, 128], strides = [1, 1, 1]} : vector<10x18x128xf32> to vector<8x16x128xf32>
    %43 = vector.extract_strided_slice %3 {offsets = [6, 0, 0, 0], sizes = [1, 1, 1, 128], strides = [1, 1, 1, 1]} : vector<9x1x1x128xf32> to vector<1x1x1x128xf32>
    %44 = vector.shape_cast %43 : vector<1x1x1x128xf32> to vector<1x1x128xf32>
    %45 = vector.broadcast %44 : vector<1x1x128xf32> to vector<8x16x128xf32>
    %46 = arith.mulf %42, %45 : vector<8x16x128xf32>
    %47 = arith.addf %41, %46 : vector<8x16x128xf32>
    %48 = vector.extract_strided_slice %6 {offsets = [2, 1, 0], sizes = [8, 16, 128], strides = [1, 1, 1]} : vector<10x18x128xf32> to vector<8x16x128xf32>
    %49 = vector.extract_strided_slice %3 {offsets = [7, 0, 0, 0], sizes = [1, 1, 1, 128], strides = [1, 1, 1, 1]} : vector<9x1x1x128xf32> to vector<1x1x1x128xf32>
    %50 = vector.shape_cast %49 : vector<1x1x1x128xf32> to vector<1x1x128xf32>
    %51 = vector.broadcast %50 : vector<1x1x128xf32> to vector<8x16x128xf32>
    %52 = arith.mulf %48, %51 : vector<8x16x128xf32>
    %53 = arith.addf %47, %52 : vector<8x16x128xf32>
    %54 = vector.extract_strided_slice %6 {offsets = [2, 2, 0], sizes = [8, 16, 128], strides = [1, 1, 1]} : vector<10x18x128xf32> to vector<8x16x128xf32>
    %55 = vector.extract_strided_slice %3 {offsets = [8, 0, 0, 0], sizes = [1, 1, 1, 128], strides = [1, 1, 1, 1]} : vector<9x1x1x128xf32> to vector<1x1x1x128xf32>
    %56 = vector.shape_cast %55 : vector<1x1x1x128xf32> to vector<1x1x128xf32>
    %57 = vector.broadcast %56 : vector<1x1x128xf32> to vector<8x16x128xf32>
    %58 = arith.mulf %54, %57 : vector<8x16x128xf32>
    %59 = arith.addf %53, %58 : vector<8x16x128xf32>
    %c0_4 = arith.constant 0 : index
    %c0_5 = arith.constant 0 : index
    %60 = vector.load %arg4[%c0_4, %c0_5] : memref<1x128xf32, #tpu.memory_space<vmem>>, vector<1x128xf32>
    %61 = vector.shape_cast %60 : vector<1x128xf32> to vector<1x1x128xf32>
    %62 = vector.broadcast %61 : vector<1x1x128xf32> to vector<8x16x128xf32>
    %63 = arith.addf %59, %62 : vector<8x16x128xf32>
    %cst = arith.constant 0.000000e+00 : f32
    %64 = vector.broadcast %cst : f32 to vector<8x16x128xf32>
    %65 = arith.maximumf %63, %64 : vector<8x16x128xf32>
    %66 = vector.shape_cast %65 : vector<8x16x128xf32> to vector<128x128xf32>
    %67 = arith.truncf %66 : vector<128x128xf32> to vector<128x128xbf16>
    %c0_6 = arith.constant 0 : index
    %c0_7 = arith.constant 0 : index
    %68 = vector.load %arg5[%c0_6, %c0_7] : memref<128x128xbf16, #tpu.memory_space<vmem>>, vector<128x128xbf16>
    %cst_8 = arith.constant dense<0.000000e+00> : vector<128x128xf32>
    %69 = tpu.matmul %67, %68, %cst_8 {dimension_numbers = #tpu.dot_dimension_numbers<[1], [0], [0], [1], [0, 0, 1, 1], [], []>} : vector<128x128xbf16>, vector<128x128xbf16>, vector<128x128xf32> -> vector<128x128xf32>
    %c0_9 = arith.constant 0 : index
    %c0_10 = arith.constant 0 : index
    %70 = vector.load %arg6[%c0_9, %c0_10] : memref<1x128xf32, #tpu.memory_space<vmem>>, vector<1x128xf32>
    %71 = vector.broadcast %70 : vector<1x128xf32> to vector<128x128xf32>
    %72 = arith.addf %69, %71 : vector<128x128xf32>
    %cst_11 = arith.constant 0.000000e+00 : f32
    %73 = vector.broadcast %cst_11 : f32 to vector<128x128xf32>
    %74 = arith.maximumf %72, %73 : vector<128x128xf32>
    %75 = vector.shape_cast %74 : vector<128x128xf32> to vector<8x16x128xf32>
    %c0_12 = arith.constant 0 : index
    %c0_13 = arith.constant 0 : index
    %c0_14 = arith.constant 0 : index
    %c0_15 = arith.constant 0 : index
    %76 = vector.load %arg7[%c0_12, %c0_13, %c0_14, %c0_15] : memref<1x8x16x128xf32, #tpu.memory_space<vmem>>, vector<1x8x16x128xf32>
    %77 = vector.shape_cast %76 : vector<1x8x16x128xf32> to vector<8x16x128xf32>
    %78 = vector.shape_cast %75 : vector<8x16x128xf32> to vector<1x8x16x128xf32>
    tpu.vector_store %arg7[%c0_12, %c0_13, %c0_14, %c0_15], %78 {strides = array<i32>} : memref<1x8x16x128xf32, #tpu.memory_space<vmem>>, vector<1x8x16x128xf32>,
    return
  }
  func.func @transform_0(%arg0: i32, %arg1: i32) -> (i32, i32, i32, i32) {
    %c0_i32 = arith.constant 0 : i32
    %c0_i32_0 = arith.constant 0 : i32
    %c0_i32_1 = arith.constant 0 : i32
    %c0_i32_2 = arith.constant 0 : i32
    return %arg0, %c0_i32, %c0_i32_0, %c0_i32_1 : i32, i32, i32, i32
  }
  func.func @transform_1(%arg0: i32, %arg1: i32) -> (i32, i32) {
    %c0_i32 = arith.constant 0 : i32
    %c0_i32_0 = arith.constant 0 : i32
    %c0_i32_1 = arith.constant 0 : i32
    return %c0_i32, %c0_i32_0 : i32, i32
  }
  func.func @transform_2(%arg0: i32, %arg1: i32) -> (i32, i32) {
    %c0_i32 = arith.constant 0 : i32
    %c0_i32_0 = arith.constant 0 : i32
    %c0_i32_1 = arith.constant 0 : i32
    return %c0_i32, %c0_i32_0 : i32, i32
  }
  func.func @transform_3(%arg0: i32, %arg1: i32) -> (i32, i32) {
    %c0_i32 = arith.constant 0 : i32
    %c0_i32_0 = arith.constant 0 : i32
    %c0_i32_1 = arith.constant 0 : i32
    return %c0_i32, %c0_i32_0 : i32, i32
  }
  func.func @transform_4(%arg0: i32, %arg1: i32) -> (i32, i32) {
    %c0_i32 = arith.constant 0 : i32
    %c0_i32_0 = arith.constant 0 : i32
    %c0_i32_1 = arith.constant 0 : i32
    return %c0_i32, %c0_i32_0 : i32, i32
  }
  func.func @transform_5(%arg0: i32, %arg1: i32) -> (i32, i32, i32, i32) {
    %c0_i32 = arith.constant 0 : i32
    %c0_i32_0 = arith.constant 0 : i32
    %c0_i32_1 = arith.constant 0 : i32
    return %arg0, %arg1, %c0_i32, %c0_i32_0 : i32, i32, i32, i32
  }
}

</mosaic_0001>

<llo_original>
// kernel: mobilenet_block.1
$region0: #{mobilenet_block.1}
  #allocation0 [shape = 'u32[]', space=smem, size = 0x4, offset = 0x4, fixed_abs, tag = 'smem constant byte address 0x4 - core index']
  #allocation1 [shape = 'u32[144,128]{1,0:T(1,128)}', space=vmem, size = 0x12000, scoped, tag = 'internal scratch']
  %s0 = inlined_call_operand.vmem [shape: f32[2,18,18,128], index: 0, kind: input, shape index: {}]
  %s1 = inlined_call_operand.vmem [shape: f32[9,128], index: 1, kind: input, shape index: {}]
  %s2 = inlined_call_operand.vmem [shape: f32[1,128], index: 2, kind: input, shape index: {}]
  %s3 = inlined_call_operand.vmem [shape: bf16[128,128], index: 3, kind: input, shape index: {}]
  %s4 = inlined_call_operand.vmem [shape: f32[1,128], index: 4, kind: input, shape index: {}]
  %s5 = inlined_call_operand.vmem [shape: f32[2,16,16,128], index: 5, kind: output, shape index: {}]
  %s6 = sld [smem:[#allocation0]]
  $region53: #{mobilenet_block.1} parent=0
    _
  %s8 = ssub.s32 1, %s6
  %s9 = scalar_select 0, %s8, %s6
  loop: start=0, step=1, limit=6
  $region2: #{mobilenet_block.1} parent=0 // loop_pre_header
    _
  $region3: #{mobilenet_block.1} parent=0 // loop_header
    %s11 = sphi 0, %s15
    %p12 = scmp.ge.s32.totalorder %s11, 6
    %s18 = sphi 0, %s30
    %s19 = sphi 0, %s26
    %s20 = sphi 0, %s18
    %s21 = sphi 0, %s19
    %s22 = sphi 0, %s20
    %s23 = sphi 0, %s21
    %s33 = sphi 0, %s35
    %s36 = sphi 0, %s33
    %s37 = sphi 0, %s36
    %s53 = sphi 0, %s37
    %s57 = sphi 0, %s57
    %s59 = sphi 0, %s57
    %s60 = sphi 0, %s59
    %s74 = sphi 0, %s60
    %s78 = sphi 0, %s78
    %s80 = sphi 0, %s78
    %s81 = sphi 0, %s80
    %s95 = sphi 0, %s81
    %s99 = sphi 0, %s99
    %s101 = sphi 0, %s99
    %s102 = sphi 0, %s101
    %s116 = sphi 0, %s102
    %s120 = sphi 0, %s120
    %s122 = sphi 0, %s120
    %s123 = sphi 0, %s122
    %s137 = sphi 0, %s123
    %s145 = sphi 0, %s147
    %s148 = sphi 0, %s145
    %s149 = sphi 0, %s148
    %s165 = sphi 0, %s149
  $region4: #{mobilenet_block.1} parent=0 // loop_header_branch
    %14 = sbr.rel (%p12) target = $region8
  $region5: #{mobilenet_block.1} parent=0 // loop_body
    %s16 = ssub.s32 %s11, 1
    %s17 = ssub.s32 %s11, 2
    %s24 = sadd.s32 1, %s19
    %p25 = scmp.ge.s32.totalorder %s24, 2
    %s26 = scalar_select %p25, 0, %s24
    %s27 = sadd.s32 1, %s18
    %s28 = scalar_select %p25, %s27, %s18
    %p29 = scmp.ge.s32.totalorder %s28, 2
    %s30 = scalar_select %p29, 0, %s28
    %s31 = ssub.s32 %s18, %s30
    %p32 = scmp.eq.s32.totalorder %s31, 0
    %s34 = sadd.s32 %s33, 1
    %s35 = scalar_select %p32, %s33, %s34
    %p38 = pneg %p32
    %p39 = scmp.eq.s32.totalorder %s11, 3
    %p40 = por %p38, %p39
    %p41 = scmp.ne.s32.totalorder %s33, %s36
    %p42 = scmp.eq.s32.totalorder %s11, 0
    %p43 = por %p41, %p42
    %p44 = scmp.ne.s32.totalorder %s33, %s36
    %p45 = scmp.eq.s32.totalorder %s16, 3
    %p46 = por %p44, %p45
    %p47 = scmp.ne.s32.totalorder %s36, %s37
    %p48 = scmp.eq.s32.totalorder %s16, 0
    %p49 = por %p47, %p48
    %p50 = scmp.ne.s32.totalorder %s36, %s37
    %p51 = scmp.eq.s32.totalorder %s17, 3
    %p52 = por %p50, %p51
    %p54 = scmp.ne.s32.totalorder %s37, %s53
    %p55 = scmp.eq.s32.totalorder %s17, 0
    %p56 = por %p54, %p55
    %s58 = sadd.s32 %s57, 1
    %p61 = scmp.eq.s32.totalorder %s11, 3
    %p62 = scmp.ne.s32.totalorder %s57, %s59
    %p63 = scmp.eq.s32.totalorder %s11, 0
    %p64 = por %p62, %p63
    %p65 = scmp.ne.s32.totalorder %s57, %s59
    %p66 = scmp.eq.s32.totalorder %s16, 3
    %p67 = por %p65, %p66
    %p68 = scmp.ne.s32.totalorder %s59, %s60
    %p69 = scmp.eq.s32.totalorder %s16, 0
    %p70 = por %p68, %p69
    %p71 = scmp.ne.s32.totalorder %s59, %s60
    %p72 = scmp.eq.s32.totalorder %s17, 3
    %p73 = por %p71, %p72
    %p75 = scmp.ne.s32.totalorder %s60, %s74
    %p76 = scmp.eq.s32.totalorder %s17, 0
    %p77 = por %p75, %p76
    %s79 = sadd.s32 %s78, 1
    %p82 = scmp.eq.s32.totalorder %s11, 3
    %p83 = scmp.ne.s32.totalorder %s78, %s80
    %p84 = scmp.eq.s32.totalorder %s11, 0
    %p85 = por %p83, %p84
    %p86 = scmp.ne.s32.totalorder %s78, %s80
    %p87 = scmp.eq.s32.totalorder %s16, 3
    %p88 = por %p86, %p87
    %p89 = scmp.ne.s32.totalorder %s80, %s81
    %p90 = scmp.eq.s32.totalorder %s16, 0
    %p91 = por %p89, %p90
    %p92 = scmp.ne.s32.totalorder %s80, %s81
    %p93 = scmp.eq.s32.totalorder %s17, 3
    %p94 = por %p92, %p93
    %p96 = scmp.ne.s32.totalorder %s81, %s95
    %p97 = scmp.eq.s32.totalorder %s17, 0
    %p98 = por %p96, %p97
    %s100 = sadd.s32 %s99, 1
    %p103 = scmp.eq.s32.totalorder %s11, 3
    %p104 = scmp.ne.s32.totalorder %s99, %s101
    %p105 = scmp.eq.s32.totalorder %s11, 0
    %p106 = por %p104, %p105
    %p107 = scmp.ne.s32.totalorder %s99, %s101
    %p108 = scmp.eq.s32.totalorder %s16, 3
    %p109 = por %p107, %p108
    %p110 = scmp.ne.s32.totalorder %s101, %s102
    %p111 = scmp.eq.s32.totalorder %s16, 0
    %p112 = por %p110, %p111
    %p113 = scmp.ne.s32.totalorder %s101, %s102
    %p114 = scmp.eq.s32.totalorder %s17, 3
    %p115 = por %p113, %p114
    %p117 = scmp.ne.s32.totalorder %s102, %s116
    %p118 = scmp.eq.s32.totalorder %s17, 0
    %p119 = por %p117, %p118
    %s121 = sadd.s32 %s120, 1
    %p124 = scmp.eq.s32.totalorder %s11, 3
    %p125 = scmp.ne.s32.totalorder %s120, %s122
    %p126 = scmp.eq.s32.totalorder %s11, 0
    %p127 = por %p125, %p126
    %p128 = scmp.ne.s32.totalorder %s120, %s122
    %p129 = scmp.eq.s32.totalorder %s16, 3
    %p130 = por %p128, %p129
    %p131 = scmp.ne.s32.totalorder %s122, %s123
    %p132 = scmp.eq.s32.totalorder %s16, 0
    %p133 = por %p131, %p132
    %p134 = scmp.ne.s32.totalorder %s122, %s123
    %p135 = scmp.eq.s32.totalorder %s17, 3
    %p136 = por %p134, %p135
    %p138 = scmp.ne.s32.totalorder %s123, %s137
    %p139 = scmp.eq.s32.totalorder %s17, 0
    %p140 = por %p138, %p139
    %s141 = ssub.s32 %s18, %s30
    %s142 = ssub.s32 %s19, %s26
    %s143 = sor.u32 %s141, %s142
    %p144 = scmp.eq.s32.totalorder %s143, 0
    %s146 = sadd.s32 %s145, 1
    %s147 = scalar_select %p144, %s145, %s146
    %p150 = pneg %p144
    %p151 = scmp.eq.s32.totalorder %s11, 3
    %p152 = por %p150, %p151
    %p153 = scmp.ne.s32.totalorder %s145, %s148
    %p154 = scmp.eq.s32.totalorder %s11, 0
    %p155 = por %p153, %p154
    %p156 = scmp.ne.s32.totalorder %s145, %s148
    %p157 = scmp.eq.s32.totalorder %s16, 3
    %p158 = por %p156, %p157
    %p159 = scmp.ne.s32.totalorder %s148, %s149
    %p160 = scmp.eq.s32.totalorder %s16, 0
    %p161 = por %p159, %p160
    %p162 = scmp.ne.s32.totalorder %s148, %s149
    %p163 = scmp.eq.s32.totalorder %s17, 3
    %p164 = por %p162, %p163
    %p166 = scmp.ne.s32.totalorder %s149, %s165
    %p167 = scmp.eq.s32.totalorder %s17, 0
    %p168 = por %p166, %p167
    %p169 = scmp.le.s32.totalorder 1, %s11
    %p170 = scmp.lt.s32.totalorder %s11, 5
    %p171 = pnand %p169, %p170
    %p172 = pneg %p171
    // Predicated region
    $region9: #{mobilenet_block.1} parent=5 // pred_check
      _
    $region10: #{mobilenet_block.1} parent=5 // pred_check_branch
      %174 = sbr.rel (%p171) target = $region12
    $region11: #{mobilenet_block.1} parent=5 // pred_region
      %s175 = ssub.s32 %s11, 1
      // Predicated region
      $region13: #{mobilenet_block.1} parent=11 // pred_check
        %p176 = pneg %p70
      $region14: #{mobilenet_block.1} parent=11 // pred_check_branch
        %178 = sbr.rel (%p176) target = $region16
      $region15: #{mobilenet_block.1} parent=11 // pred_region
        _
      $region16: #{mobilenet_block.1} parent=11 // pred_fallthru
        _
      // Predicated region
      $region17: #{mobilenet_block.1} parent=11 // pred_check
        %p179 = pneg %p91
      $region18: #{mobilenet_block.1} parent=11 // pred_check_branch
        %181 = sbr.rel (%p179) target = $region20
      $region19: #{mobilenet_block.1} parent=11 // pred_region
        _
      $region20: #{mobilenet_block.1} parent=11 // pred_fallthru
        _
      // Predicated region
      $region21: #{mobilenet_block.1} parent=11 // pred_check
        %p182 = pneg %p112
      $region22: #{mobilenet_block.1} parent=11 // pred_check_branch
        %184 = sbr.rel (%p182) target = $region24
      $region23: #{mobilenet_block.1} parent=11 // pred_region
        _
      $region24: #{mobilenet_block.1} parent=11 // pred_fallthru
        _
      // Predicated region
      $region25: #{mobilenet_block.1} parent=11 // pred_check
        %p185 = pneg %p133
      $region26: #{mobilenet_block.1} parent=11 // pred_check_branch
        %187 = sbr.rel (%p185) target = $region28
      $region27: #{mobilenet_block.1} parent=11 // pred_region
        _
      $region28: #{mobilenet_block.1} parent=11 // pred_fallthru
        _
    $region12: #{mobilenet_block.1} parent=5 // pred_fallthru
      _
    %p188 = scmp.lt.s32.totalorder %s11, 4
    // Predicated region
    $region29: #{mobilenet_block.1} parent=5 // pred_check
      %p189 = pneg %p188
    $region30: #{mobilenet_block.1} parent=5 // pred_check_branch
      %191 = sbr.rel (%p189) target = $region32
    $region31: #{mobilenet_block.1} parent=5 // pred_region
      // Predicated region
      $region33: #{mobilenet_block.1} parent=31 // pred_check
        %p192 = pneg %p43
      $region34: #{mobilenet_block.1} parent=31 // pred_check_branch
        %194 = sbr.rel (%p192) target = $region36
      $region35: #{mobilenet_block.1} parent=31 // pred_region
        %p195 = scmp.lt.s32.totalorder %s18, 1
        %s196 = scalar_select %p195, %s18, 1
        %s197 = smul.addr %s196, 54
        %s198 = smul.addr %s197, 8
        %s199 = scalar_lea.vmem %s0, %s198
      $region36: #{mobilenet_block.1} parent=31 // pred_fallthru
        _
    $region32: #{mobilenet_block.1} parent=5 // pred_fallthru
      _
    %p200 = scmp.le.s32.totalorder 1, %s11
    %p201 = scmp.lt.s32.totalorder %s11, 5
    %p202 = pnand %p200, %p201
    %p203 = pneg %p202
    // Predicated region
    $region37: #{mobilenet_block.1} parent=5 // pred_check
      _
    $region38: #{mobilenet_block.1} parent=5 // pred_check_branch
      %205 = sbr.rel (%p202) target = $region40
    $region39: #{mobilenet_block.1} parent=5 // pred_region
      %s206 = ssub.s32 %s11, 1
      %p207 = scmp.lt.s32.totalorder %s20, 1
      %s208 = scalar_select %p207, %s20, 1
      %s209 = smul.addr %s208, 54
      %s210 = smul.addr %s209, 8
      %s211 = scalar_lea.vmem %s0, %s210
      %p212 = pneg %p49
      %p213 = pneg %p46
      %p214 = pneg %p70
      %p215 = pneg %p67
      %p216 = pneg %p91
      %p217 = pneg %p88
      %p218 = pneg %p112
      %p219 = pneg %p109
      %p220 = pneg %p133
      %p221 = pneg %p130
      %p222 = pneg %p161
      %p223 = pneg %p158
      %s224 = smul.u32 8, %s21
      %p225 = scmp.lt.s32.totalorder %s20, 1
      %s226 = scalar_select %p225, %s20, 1
      %p227 = scmp.lt.s32.totalorder %s224, 15
      %s228 = scalar_select %p227, %s224, 15
      %s229 = smul.addr %s228, 2
      %s230 = smul.addr %s226, 32
      %s231 = sadd.s32 %s229, %s230
      %s232 = smul.addr %s231, 8
      %s233 = scalar_lea.vmem %s5, %s232
      %p234 = scmp.lt.s32.totalorder %s20, 1
      %s235 = scalar_select %p234, %s20, 1
      %s236 = smul.addr %s235, 54
      %s237 = smul.addr %s236, 8
      %s238 = scalar_lea.vmem %s0, %s237
      %s239 = smul.u32 8, %s21
      %p240 = scmp.lt.s32.totalorder %s20, 1
      %s241 = scalar_select %p240, %s20, 1
      %p242 = scmp.lt.s32.totalorder %s239, 15
      %s243 = scalar_select %p242, %s239, 15
      %s244 = smul.addr %s243, 2
      %s245 = smul.addr %s241, 32
      %s246 = sadd.s32 %s244, %s245
      %s247 = smul.addr %s246, 8
      %s248 = scalar_lea.vmem %s5, %s247
      %s249 = smul.u32 8, %s21
      %s251 = smul.u32 %s21, 8
      %v252 = vld [vmem:[%s1] sm:$0xff]
      %v253 = vld [vmem:[%s1 + $0x8] sm:$0x1]
      %s254 = smul.u32 %s251, 24
      %s255 = scalar_lea.vmem %s238, %s254
      %v256 = vld [vmem:[%s255] sm:$0xff]
      %v257 = vld [vmem:[%s255 + $0x8] sm:$0xff]
      %v258 = vld [vmem:[%s255 + $0x10] sm:$0x3]
      %v259 = vld [vmem:[%s255 + $0x18] sm:$0xff]
      %v260 = vld [vmem:[%s255 + $0x20] sm:$0xff]
      %v261 = vld [vmem:[%s255 + $0x28] sm:$0x3]
      %v262 = vld [vmem:[%s255 + $0x30] sm:$0xff]
      %v263 = vld [vmem:[%s255 + $0x38] sm:$0xff]
      %v264 = vld [vmem:[%s255 + $0x40] sm:$0x3]
      %v265 = vld [vmem:[%s255 + $0x48] sm:$0xff]
      %v266 = vld [vmem:[%s255 + $0x50] sm:$0xff]
      %v267 = vld [vmem:[%s255 + $0x58] sm:$0x3]
      %v268 = vld [vmem:[%s255 + $0x60] sm:$0xff]
      %v269 = vld [vmem:[%s255 + $0x68] sm:$0xff]
      %v270 = vld [vmem:[%s255 + $0x70] sm:$0x3]
      %v271 = vld [vmem:[%s255 + $0x78] sm:$0xff]
      %v272 = vld [vmem:[%s255 + $0x80] sm:$0xff]
      %v273 = vld [vmem:[%s255 + $0x88] sm:$0x3]
      %v274 = vld [vmem:[%s255 + $0x90] sm:$0xff]
      %v275 = vld [vmem:[%s255 + $0x98] sm:$0xff]
      %v276 = vld [vmem:[%s255 + $0xa0] sm:$0x3]
      %v277 = vld [vmem:[%s255 + $0xa8] sm:$0xff]
      %v278 = vld [vmem:[%s255 + $0xb0] sm:$0xff]
      %v279 = vld [vmem:[%s255 + $0xb8] sm:$0x3]
      %v280 = vld [vmem:[%s255 + $0xc0] sm:$0xff]
      %v281 = vld [vmem:[%s255 + $0xc8] sm:$0xff]
      %v282 = vld [vmem:[%s255 + $0xd0] sm:$0x3]
      %v283 = vld [vmem:[%s255 + $0xd8] sm:$0xff]
      %v284 = vld [vmem:[%s255 + $0xe0] sm:$0xff]
      %v285 = vld [vmem:[%s255 + $0xe8] sm:$0x3]
      %v286 = vlaneseq
      %v287 = vshrl.u32 %v286, 7
      %v288 = vsub.s32 0, %v287
      %v289 = vrot.slane %v252, %v288
      %v290 = vmul.f32 %v256, %v289
      %v291 = vmul.f32 %v257, %v289
      %v292 = vmul.f32 %v259, %v289
      %v293 = vmul.f32 %v260, %v289
      %v294 = vmul.f32 %v262, %v289
      %v295 = vmul.f32 %v263, %v289
      %v296 = vmul.f32 %v265, %v289
      %v297 = vmul.f32 %v266, %v289
      %v298 = vmul.f32 %v268, %v289
      %v299 = vmul.f32 %v269, %v289
      %v300 = vmul.f32 %v271, %v289
      %v301 = vmul.f32 %v272, %v289
      %v302 = vmul.f32 %v274, %v289
      %v303 = vmul.f32 %v275, %v289
      %v304 = vmul.f32 %v277, %v289
      %v305 = vmul.f32 %v278, %v289
      %v306 = vlaneseq
      %v307 = vshrl.u32 %v306, 7
      %v308 = vsub.s32 1, %v307
      %v309 = vrot.slane %v252, %v308
      %v310 = vmul.f32 %v256, %v309
      %v311 = vmul.f32 %v257, %v309
      %v312 = vmul.f32 %v258, %v309
      %v313 = vmul.f32 %v259, %v309
      %v314 = vmul.f32 %v260, %v309
      %v315 = vmul.f32 %v261, %v309
      %v316 = vmul.f32 %v262, %v309
      %v317 = vmul.f32 %v263, %v309
      %v318 = vmul.f32 %v264, %v309
      %v319 = vmul.f32 %v265, %v309
      %v320 = vmul.f32 %v266, %v309
      %v321 = vmul.f32 %v267, %v309
      %v322 = vmul.f32 %v268, %v309
      %v323 = vmul.f32 %v269, %v309
      %v324 = vmul.f32 %v270, %v309
      %v325 = vmul.f32 %v271, %v309
      %v326 = vmul.f32 %v272, %v309
      %v327 = vmul.f32 %v273, %v309
      %v328 = vmul.f32 %v274, %v309
      %v329 = vmul.f32 %v275, %v309
      %v330 = vmul.f32 %v276, %v309
      %v331 = vmul.f32 %v277, %v309
      %v332 = vmul.f32 %v278, %v309
      %v333 = vmul.f32 %v279, %v309
      %vm358 = vcmask 1046528
      %v359 = vrot.slane %v310, 1
      %v360 = vrot.slane %v311, 1
      %v361 = vsel %vm358, %v359, %v360
      %v362 = vrot.slane %v312, 1
      %v363 = vsel %vm358, %v360, %v362
      %v364 = vrot.slane %v313, 1
      %v365 = vrot.slane %v314, 1
      %v366 = vsel %vm358, %v364, %v365
      %v367 = vrot.slane %v315, 1
      %v368 = vsel %vm358, %v365, %v367
      %v369 = vrot.slane %v316, 1
      %v370 = vrot.slane %v317, 1
      %v371 = vsel %vm358, %v369, %v370
      %v372 = vrot.slane %v318, 1
      %v373 = vsel %vm358, %v370, %v372
      %v374 = vrot.slane %v319, 1
      %v375 = vrot.slane %v320, 1
      %v376 = vsel %vm358, %v374, %v375
      %v377 = vrot.slane %v321, 1
      %v378 = vsel %vm358, %v375, %v377
      %v379 = vrot.slane %v322, 1
      %v380 = vrot.slane %v323, 1
      %v381 = vsel %vm358, %v379, %v380
      %v382 = vrot.slane %v324, 1
      %v383 = vsel %vm358, %v380, %v382
      %v384 = vrot.slane %v325, 1
      %v385 = vrot.slane %v326, 1
      %v386 = vsel %vm358, %v384, %v385
      %v387 = vrot.slane %v327, 1
      %v388 = vsel %vm358, %v385, %v387
      %v389 = vrot.slane %v328, 1
      %v390 = vrot.slane %v329, 1
      %v391 = vsel %vm358, %v389, %v390
      %v392 = vrot.slane %v330, 1
      %v393 = vsel %vm358, %v390, %v392
      %v394 = vrot.slane %v331, 1
      %v395 = vrot.slane %v332, 1
      %v396 = vsel %vm358, %v394, %v395
      %v397 = vrot.slane %v333, 1
      %v398 = vsel %vm358, %v395, %v397
      %v415 = vadd.f32 %v290, %v361
      %v416 = vadd.f32 %v291, %v363
      %v417 = vadd.f32 %v292, %v366
      %v418 = vadd.f32 %v293, %v368
      %v419 = vadd.f32 %v294, %v371
      %v420 = vadd.f32 %v295, %v373
      %v421 = vadd.f32 %v296, %v376
      %v422 = vadd.f32 %v297, %v378
      %v423 = vadd.f32 %v298, %v381
      %v424 = vadd.f32 %v299, %v383
      %v425 = vadd.f32 %v300, %v386
      %v426 = vadd.f32 %v301, %v388
      %v427 = vadd.f32 %v302, %v391
      %v428 = vadd.f32 %v303, %v393
      %v429 = vadd.f32 %v304, %v396
      %v430 = vadd.f32 %v305, %v398
      %v431 = vlaneseq
      %v432 = vshrl.u32 %v431, 7
      %v433 = vsub.s32 2, %v432
      %v434 = vrot.slane %v252, %v433
      %v435 = vmul.f32 %v256, %v434
      %v436 = vmul.f32 %v257, %v434
      %v437 = vmul.f32 %v258, %v434
      %v438 = vmul.f32 %v259, %v434
      %v439 = vmul.f32 %v260, %v434
      %v440 = vmul.f32 %v261, %v434
      %v441 = vmul.f32 %v262, %v434
      %v442 = vmul.f32 %v263, %v434
      %v443 = vmul.f32 %v264, %v434
      %v444 = vmul.f32 %v265, %v434
      %v445 = vmul.f32 %v266, %v434
      %v446 = vmul.f32 %v267, %v434
      %v447 = vmul.f32 %v268, %v434
      %v448 = vmul.f32 %v269, %v434
      %v449 = vmul.f32 %v270, %v434
      %v450 = vmul.f32 %v271, %v434
      %v451 = vmul.f32 %v272, %v434
      %v452 = vmul.f32 %v273, %v434
      %v453 = vmul.f32 %v274, %v434
      %v454 = vmul.f32 %v275, %v434
      %v455 = vmul.f32 %v276, %v434
      %v456 = vmul.f32 %v277, %v434
      %v457 = vmul.f32 %v278, %v434
      %v458 = vmul.f32 %v279, %v434
      %vm483 = vcmask 1045504
      %v484 = vrot.slane %v435, 2
      %v485 = vrot.slane %v436, 2
      %v486 = vsel %vm483, %v484, %v485
      %v487 = vrot.slane %v437, 2
      %v488 = vsel %vm483, %v485, %v487
      %v489 = vrot.slane %v438, 2
      %v490 = vrot.slane %v439, 2
      %v491 = vsel %vm483, %v489, %v490
      %v492 = vrot.slane %v440, 2
      %v493 = vsel %vm483, %v490, %v492
      %v494 = vrot.slane %v441, 2
      %v495 = vrot.slane %v442, 2
      %v496 = vsel %vm483, %v494, %v495
      %v497 = vrot.slane %v443, 2
      %v498 = vsel %vm483, %v495, %v497
      %v499 = vrot.slane %v444, 2
      %v500 = vrot.slane %v445, 2
      %v501 = vsel %vm483, %v499, %v500
      %v502 = vrot.slane %v446, 2
      %v503 = vsel %vm483, %v500, %v502
      %v504 = vrot.slane %v447, 2
      %v505 = vrot.slane %v448, 2
      %v506 = vsel %vm483, %v504, %v505
      %v507 = vrot.slane %v449, 2
      %v508 = vsel %vm483, %v505, %v507
      %v509 = vrot.slane %v450, 2
      %v510 = vrot.slane %v451, 2
      %v511 = vsel %vm483, %v509, %v510
      %v512 = vrot.slane %v452, 2
      %v513 = vsel %vm483, %v510, %v512
      %v514 = vrot.slane %v453, 2
      %v515 = vrot.slane %v454, 2
      %v516 = vsel %vm483, %v514, %v515
      %v517 = vrot.slane %v455, 2
      %v518 = vsel %vm483, %v515, %v517
      %v519 = vrot.slane %v456, 2
      %v520 = vrot.slane %v457, 2
      %v521 = vsel %vm483, %v519, %v520
      %v522 = vrot.slane %v458, 2
      %v523 = vsel %vm483, %v520, %v522
      %v540 = vadd.f32 %v415, %v486
      %v541 = vadd.f32 %v416, %v488
      %v542 = vadd.f32 %v417, %v491
      %v543 = vadd.f32 %v418, %v493
      %v544 = vadd.f32 %v419, %v496
      %v545 = vadd.f32 %v420, %v498
      %v546 = vadd.f32 %v421, %v501
      %v547 = vadd.f32 %v422, %v503
      %v548 = vadd.f32 %v423, %v506
      %v549 = vadd.f32 %v424, %v508
      %v550 = vadd.f32 %v425, %v511
      %v551 = vadd.f32 %v426, %v513
      %v552 = vadd.f32 %v427, %v516
      %v553 = vadd.f32 %v428, %v518
      %v554 = vadd.f32 %v429, %v521
      %v555 = vadd.f32 %v430, %v523
      %v556 = vlaneseq
      %v557 = vshrl.u32 %v556, 7
      %v558 = vsub.s32 3, %v557
      %v559 = vrot.slane %v252, %v558
      %v560 = vmul.f32 %v259, %v559
      %v561 = vmul.f32 %v260, %v559
      %v562 = vmul.f32 %v262, %v559
      %v563 = vmul.f32 %v263, %v559
      %v564 = vmul.f32 %v265, %v559
      %v565 = vmul.f32 %v266, %v559
      %v566 = vmul.f32 %v268, %v559
      %v567 = vmul.f32 %v269, %v559
      %v568 = vmul.f32 %v271, %v559
      %v569 = vmul.f32 %v272, %v559
      %v570 = vmul.f32 %v274, %v559
      %v571 = vmul.f32 %v275, %v559
      %v572 = vmul.f32 %v277, %v559
      %v573 = vmul.f32 %v278, %v559
      %v574 = vmul.f32 %v280, %v559
      %v575 = vmul.f32 %v281, %v559
      %v576 = vadd.f32 %v540, %v560
      %v577 = vadd.f32 %v541, %v561
      %v578 = vadd.f32 %v542, %v562
      %v579 = vadd.f32 %v543, %v563
      %v580 = vadd.f32 %v544, %v564
      %v581 = vadd.f32 %v545, %v565
      %v582 = vadd.f32 %v546, %v566
      %v583 = vadd.f32 %v547, %v567
      %v584 = vadd.f32 %v548, %v568
      %v585 = vadd.f32 %v549, %v569
      %v586 = vadd.f32 %v550, %v570
      %v587 = vadd.f32 %v551, %v571
      %v588 = vadd.f32 %v552, %v572
      %v589 = vadd.f32 %v553, %v573
      %v590 = vadd.f32 %v554, %v574
      %v591 = vadd.f32 %v555, %v575
      %v592 = vlaneseq
      %v593 = vshrl.u32 %v592, 7
      %v594 = vsub.s32 4, %v593
      %v595 = vrot.slane %v252, %v594
      %v596 = vmul.f32 %v259, %v595
      %v597 = vmul.f32 %v260, %v595
      %v598 = vmul.f32 %v261, %v595
      %v599 = vmul.f32 %v262, %v595
      %v600 = vmul.f32 %v263, %v595
      %v601 = vmul.f32 %v264, %v595
      %v602 = vmul.f32 %v265, %v595
      %v603 = vmul.f32 %v266, %v595
      %v604 = vmul.f32 %v267, %v595
      %v605 = vmul.f32 %v268, %v595
      %v606 = vmul.f32 %v269, %v595
      %v607 = vmul.f32 %v270, %v595
      %v608 = vmul.f32 %v271, %v595
      %v609 = vmul.f32 %v272, %v595
      %v610 = vmul.f32 %v273, %v595
      %v611 = vmul.f32 %v274, %v595
      %v612 = vmul.f32 %v275, %v595
      %v613 = vmul.f32 %v276, %v595
      %v614 = vmul.f32 %v277, %v595
      %v615 = vmul.f32 %v278, %v595
      %v616 = vmul.f32 %v279, %v595
      %v617 = vmul.f32 %v280, %v595
      %v618 = vmul.f32 %v281, %v595
      %v619 = vmul.f32 %v282, %v595
      %v644 = vrot.slane %v596, 1
      %v645 = vrot.slane %v597, 1
      %v646 = vsel %vm358, %v644, %v645
      %v647 = vrot.slane %v598, 1
      %v648 = vsel %vm358, %v645, %v647
      %v649 = vrot.slane %v599, 1
      %v650 = vrot.slane %v600, 1
      %v651 = vsel %vm358, %v649, %v650
      %v652 = vrot.slane %v601, 1
      %v653 = vsel %vm358, %v650, %v652
      %v654 = vrot.slane %v602, 1
      %v655 = vrot.slane %v603, 1
      %v656 = vsel %vm358, %v654, %v655
      %v657 = vrot.slane %v604, 1
      %v658 = vsel %vm358, %v655, %v657
      %v659 = vrot.slane %v605, 1
      %v660 = vrot.slane %v606, 1
      %v661 = vsel %vm358, %v659, %v660
      %v662 = vrot.slane %v607, 1
      %v663 = vsel %vm358, %v660, %v662
      %v664 = vrot.slane %v608, 1
      %v665 = vrot.slane %v609, 1
      %v666 = vsel %vm358, %v664, %v665
      %v667 = vrot.slane %v610, 1
      %v668 = vsel %vm358, %v665, %v667
      %v669 = vrot.slane %v611, 1
      %v670 = vrot.slane %v612, 1
      %v671 = vsel %vm358, %v669, %v670
      %v672 = vrot.slane %v613, 1
      %v673 = vsel %vm358, %v670, %v672
      %v674 = vrot.slane %v614, 1
      %v675 = vrot.slane %v615, 1
      %v676 = vsel %vm358, %v674, %v675
      %v677 = vrot.slane %v616, 1
      %v678 = vsel %vm358, %v675, %v677
      %v679 = vrot.slane %v617, 1
      %v680 = vrot.slane %v618, 1
      %v681 = vsel %vm358, %v679, %v680
      %v682 = vrot.slane %v619, 1
      %v683 = vsel %vm358, %v680, %v682
      %v700 = vadd.f32 %v576, %v646
      %v701 = vadd.f32 %v577, %v648
      %v702 = vadd.f32 %v578, %v651
      %v703 = vadd.f32 %v579, %v653
      %v704 = vadd.f32 %v580, %v656
      %v705 = vadd.f32 %v581, %v658
      %v706 = vadd.f32 %v582, %v661
      %v707 = vadd.f32 %v583, %v663
      %v708 = vadd.f32 %v584, %v666
      %v709 = vadd.f32 %v585, %v668
      %v710 = vadd.f32 %v586, %v671
      %v711 = vadd.f32 %v587, %v673
      %v712 = vadd.f32 %v588, %v676
      %v713 = vadd.f32 %v589, %v678
      %v714 = vadd.f32 %v590, %v681
      %v715 = vadd.f32 %v591, %v683
      %v716 = vlaneseq
      %v717 = vshrl.u32 %v716, 7
      %v718 = vsub.s32 5, %v717
      %v719 = vrot.slane %v252, %v718
      %v720 = vmul.f32 %v259, %v719
      %v721 = vmul.f32 %v260, %v719
      %v722 = vmul.f32 %v261, %v719
      %v723 = vmul.f32 %v262, %v719
      %v724 = vmul.f32 %v263, %v719
      %v725 = vmul.f32 %v264, %v719
      %v726 = vmul.f32 %v265, %v719
      %v727 = vmul.f32 %v266, %v719
      %v728 = vmul.f32 %v267, %v719
      %v729 = vmul.f32 %v268, %v719
      %v730 = vmul.f32 %v269, %v719
      %v731 = vmul.f32 %v270, %v719
      %v732 = vmul.f32 %v271, %v719
      %v733 = vmul.f32 %v272, %v719
      %v734 = vmul.f32 %v273, %v719
      %v735 = vmul.f32 %v274, %v719
      %v736 = vmul.f32 %v275, %v719
      %v737 = vmul.f32 %v276, %v719
      %v738 = vmul.f32 %v277, %v719
      %v739 = vmul.f32 %v278, %v719
      %v740 = vmul.f32 %v279, %v719
      %v741 = vmul.f32 %v280, %v719
      %v742 = vmul.f32 %v281, %v719
      %v743 = vmul.f32 %v282, %v719
      %v768 = vrot.slane %v720, 2
      %v769 = vrot.slane %v721, 2
      %v770 = vsel %vm483, %v768, %v769
      %v771 = vrot.slane %v722, 2
      %v772 = vsel %vm483, %v769, %v771
      %v773 = vrot.slane %v723, 2
      %v774 = vrot.slane %v724, 2
      %v775 = vsel %vm483, %v773, %v774
      %v776 = vrot.slane %v725, 2
      %v777 = vsel %vm483, %v774, %v776
      %v778 = vrot.slane %v726, 2
      %v779 = vrot.slane %v727, 2
      %v780 = vsel %vm483, %v778, %v779
      %v781 = vrot.slane %v728, 2
      %v782 = vsel %vm483, %v779, %v781
      %v783 = vrot.slane %v729, 2
      %v784 = vrot.slane %v730, 2
      %v785 = vsel %vm483, %v783, %v784
      %v786 = vrot.slane %v731, 2
      %v787 = vsel %vm483, %v784, %v786
      %v788 = vrot.slane %v732, 2
      %v789 = vrot.slane %v733, 2
      %v790 = vsel %vm483, %v788, %v789
      %v791 = vrot.slane %v734, 2
      %v792 = vsel %vm483, %v789, %v791
      %v793 = vrot.slane %v735, 2
      %v794 = vrot.slane %v736, 2
      %v795 = vsel %vm483, %v793, %v794
      %v796 = vrot.slane %v737, 2
      %v797 = vsel %vm483, %v794, %v796
      %v798 = vrot.slane %v738, 2
      %v799 = vrot.slane %v739, 2
      %v800 = vsel %vm483, %v798, %v799
      %v801 = vrot.slane %v740, 2
      %v802 = vsel %vm483, %v799, %v801
      %v803 = vrot.slane %v741, 2
      %v804 = vrot.slane %v742, 2
      %v805 = vsel %vm483, %v803, %v804
      %v806 = vrot.slane %v743, 2
      %v807 = vsel %vm483, %v804, %v806
      %v824 = vadd.f32 %v700, %v770
      %v825 = vadd.f32 %v701, %v772
      %v826 = vadd.f32 %v702, %v775
      %v827 = vadd.f32 %v703, %v777
      %v828 = vadd.f32 %v704, %v780
      %v829 = vadd.f32 %v705, %v782
      %v830 = vadd.f32 %v706, %v785
      %v831 = vadd.f32 %v707, %v787
      %v832 = vadd.f32 %v708, %v790
      %v833 = vadd.f32 %v709, %v792
      %v834 = vadd.f32 %v710, %v795
      %v835 = vadd.f32 %v711, %v797
      %v836 = vadd.f32 %v712, %v800
      %v837 = vadd.f32 %v713, %v802
      %v838 = vadd.f32 %v714, %v805
      %v839 = vadd.f32 %v715, %v807
      %v840 = vlaneseq
      %v841 = vshrl.u32 %v840, 7
      %v842 = vsub.s32 6, %v841
      %v843 = vrot.slane %v252, %v842
      %v844 = vmul.f32 %v262, %v843
      %v845 = vmul.f32 %v263, %v843
      %v846 = vmul.f32 %v265, %v843
      %v847 = vmul.f32 %v266, %v843
      %v848 = vmul.f32 %v268, %v843
      %v849 = vmul.f32 %v269, %v843
      %v850 = vmul.f32 %v271, %v843
      %v851 = vmul.f32 %v272, %v843
      %v852 = vmul.f32 %v274, %v843
      %v853 = vmul.f32 %v275, %v843
      %v854 = vmul.f32 %v277, %v843
      %v855 = vmul.f32 %v278, %v843
      %v856 = vmul.f32 %v280, %v843
      %v857 = vmul.f32 %v281, %v843
      %v858 = vmul.f32 %v283, %v843
      %v859 = vmul.f32 %v284, %v843
      %v860 = vadd.f32 %v824, %v844
      %v861 = vadd.f32 %v825, %v845
      %v862 = vadd.f32 %v826, %v846
      %v863 = vadd.f32 %v827, %v847
      %v864 = vadd.f32 %v828, %v848
      %v865 = vadd.f32 %v829, %v849
      %v866 = vadd.f32 %v830, %v850
      %v867 = vadd.f32 %v831, %v851
      %v868 = vadd.f32 %v832, %v852
      %v869 = vadd.f32 %v833, %v853
      %v870 = vadd.f32 %v834, %v854
      %v871 = vadd.f32 %v835, %v855
      %v872 = vadd.f32 %v836, %v856
      %v873 = vadd.f32 %v837, %v857
      %v874 = vadd.f32 %v838, %v858
      %v875 = vadd.f32 %v839, %v859
      %v876 = vlaneseq
      %v877 = vshrl.u32 %v876, 7
      %v878 = vsub.s32 7, %v877
      %v879 = vrot.slane %v252, %v878
      %v880 = vmul.f32 %v262, %v879
      %v881 = vmul.f32 %v263, %v879
      %v882 = vmul.f32 %v264, %v879
      %v883 = vmul.f32 %v265, %v879
      %v884 = vmul.f32 %v266, %v879
      %v885 = vmul.f32 %v267, %v879
      %v886 = vmul.f32 %v268, %v879
      %v887 = vmul.f32 %v269, %v879
      %v888 = vmul.f32 %v270, %v879
      %v889 = vmul.f32 %v271, %v879
      %v890 = vmul.f32 %v272, %v879
      %v891 = vmul.f32 %v273, %v879
      %v892 = vmul.f32 %v274, %v879
      %v893 = vmul.f32 %v275, %v879
      %v894 = vmul.f32 %v276, %v879
      %v895 = vmul.f32 %v277, %v879
      %v896 = vmul.f32 %v278, %v879
      %v897 = vmul.f32 %v279, %v879
      %v898 = vmul.f32 %v280, %v879
      %v899 = vmul.f32 %v281, %v879
      %v900 = vmul.f32 %v282, %v879
      %v901 = vmul.f32 %v283, %v879
      %v902 = vmul.f32 %v284, %v879
      %v903 = vmul.f32 %v285, %v879
      %v928 = vrot.slane %v880, 1
      %v929 = vrot.slane %v881, 1
      %v930 = vsel %vm358, %v928, %v929
      %v931 = vrot.slane %v882, 1
      %v932 = vsel %vm358, %v929, %v931
      %v933 = vrot.slane %v883, 1
      %v934 = vrot.slane %v884, 1
      %v935 = vsel %vm358, %v933, %v934
      %v936 = vrot.slane %v885, 1
      %v937 = vsel %vm358, %v934, %v936
      %v938 = vrot.slane %v886, 1
      %v939 = vrot.slane %v887, 1
      %v940 = vsel %vm358, %v938, %v939
      %v941 = vrot.slane %v888, 1
      %v942 = vsel %vm358, %v939, %v941
      %v943 = vrot.slane %v889, 1
      %v944 = vrot.slane %v890, 1
      %v945 = vsel %vm358, %v943, %v944
      %v946 = vrot.slane %v891, 1
      %v947 = vsel %vm358, %v944, %v946
      %v948 = vrot.slane %v892, 1
      %v949 = vrot.slane %v893, 1
      %v950 = vsel %vm358, %v948, %v949
      %v951 = vrot.slane %v894, 1
      %v952 = vsel %vm358, %v949, %v951
      %v953 = vrot.slane %v895, 1
      %v954 = vrot.slane %v896, 1
      %v955 = vsel %vm358, %v953, %v954
      %v956 = vrot.slane %v897, 1
      %v957 = vsel %vm358, %v954, %v956
      %v958 = vrot.slane %v898, 1
      %v959 = vrot.slane %v899, 1
      %v960 = vsel %vm358, %v958, %v959
      %v961 = vrot.slane %v900, 1
      %v962 = vsel %vm358, %v959, %v961
      %v963 = vrot.slane %v901, 1
      %v964 = vrot.slane %v902, 1
      %v965 = vsel %vm358, %v963, %v964
      %v966 = vrot.slane %v903, 1
      %v967 = vsel %vm358, %v964, %v966
      %v984 = vadd.f32 %v860, %v930
      %v985 = vadd.f32 %v861, %v932
      %v986 = vadd.f32 %v862, %v935
      %v987 = vadd.f32 %v863, %v937
      %v988 = vadd.f32 %v864, %v940
      %v989 = vadd.f32 %v865, %v942
      %v990 = vadd.f32 %v866, %v945
      %v991 = vadd.f32 %v867, %v947
      %v992 = vadd.f32 %v868, %v950
      %v993 = vadd.f32 %v869, %v952
      %v994 = vadd.f32 %v870, %v955
      %v995 = vadd.f32 %v871, %v957
      %v996 = vadd.f32 %v872, %v960
      %v997 = vadd.f32 %v873, %v962
      %v998 = vadd.f32 %v874, %v965
      %v999 = vadd.f32 %v875, %v967
      %v1000 = vlaneseq
      %v1001 = vshrl.u32 %v1000, 7
      %v1002 = vsub.s32 0, %v1001
      %v1003 = vrot.slane %v253, %v1002
      %v1004 = vmul.f32 %v262, %v1003
      %v1005 = vmul.f32 %v263, %v1003
      %v1006 = vmul.f32 %v264, %v1003
      %v1007 = vmul.f32 %v265, %v1003
      %v1008 = vmul.f32 %v266, %v1003
      %v1009 = vmul.f32 %v267, %v1003
      %v1010 = vmul.f32 %v268, %v1003
      %v1011 = vmul.f32 %v269, %v1003
      %v1012 = vmul.f32 %v270, %v1003
      %v1013 = vmul.f32 %v271, %v1003
      %v1014 = vmul.f32 %v272, %v1003
      %v1015 = vmul.f32 %v273, %v1003
      %v1016 = vmul.f32 %v274, %v1003
      %v1017 = vmul.f32 %v275, %v1003
      %v1018 = vmul.f32 %v276, %v1003
      %v1019 = vmul.f32 %v277, %v1003
      %v1020 = vmul.f32 %v278, %v1003
      %v1021 = vmul.f32 %v279, %v1003
      %v1022 = vmul.f32 %v280, %v1003
      %v1023 = vmul.f32 %v281, %v1003
      %v1024 = vmul.f32 %v282, %v1003
      %v1025 = vmul.f32 %v283, %v1003
      %v1026 = vmul.f32 %v284, %v1003
      %v1027 = vmul.f32 %v285, %v1003
      %v1052 = vrot.slane %v1004, 2
      %v1053 = vrot.slane %v1005, 2
      %v1054 = vsel %vm483, %v1052, %v1053
      %v1055 = vrot.slane %v1006, 2
      %v1056 = vsel %vm483, %v1053, %v1055
      %v1057 = vrot.slane %v1007, 2
      %v1058 = vrot.slane %v1008, 2
      %v1059 = vsel %vm483, %v1057, %v1058
      %v1060 = vrot.slane %v1009, 2
      %v1061 = vsel %vm483, %v1058, %v1060
      %v1062 = vrot.slane %v1010, 2
      %v1063 = vrot.slane %v1011, 2
      %v1064 = vsel %vm483, %v1062, %v1063
      %v1065 = vrot.slane %v1012, 2
      %v1066 = vsel %vm483, %v1063, %v1065
      %v1067 = vrot.slane %v1013, 2
      %v1068 = vrot.slane %v1014, 2
      %v1069 = vsel %vm483, %v1067, %v1068
      %v1070 = vrot.slane %v1015, 2
      %v1071 = vsel %vm483, %v1068, %v1070
      %v1072 = vrot.slane %v1016, 2
      %v1073 = vrot.slane %v1017, 2
      %v1074 = vsel %vm483, %v1072, %v1073
      %v1075 = vrot.slane %v1018, 2
      %v1076 = vsel %vm483, %v1073, %v1075
      %v1077 = vrot.slane %v1019, 2
      %v1078 = vrot.slane %v1020, 2
      %v1079 = vsel %vm483, %v1077, %v1078
      %v1080 = vrot.slane %v1021, 2
      %v1081 = vsel %vm483, %v1078, %v1080
      %v1082 = vrot.slane %v1022, 2
      %v1083 = vrot.slane %v1023, 2
      %v1084 = vsel %vm483, %v1082, %v1083
      %v1085 = vrot.slane %v1024, 2
      %v1086 = vsel %vm483, %v1083, %v1085
      %v1087 = vrot.slane %v1025, 2
      %v1088 = vrot.slane %v1026, 2
      %v1089 = vsel %vm483, %v1087, %v1088
      %v1090 = vrot.slane %v1027, 2
      %v1091 = vsel %vm483, %v1088, %v1090
      %v1108 = vadd.f32 %v984, %v1054
      %v1109 = vadd.f32 %v985, %v1056
      %v1110 = vadd.f32 %v986, %v1059
      %v1111 = vadd.f32 %v987, %v1061
      %v1112 = vadd.f32 %v988, %v1064
      %v1113 = vadd.f32 %v989, %v1066
      %v1114 = vadd.f32 %v990, %v1069
      %v1115 = vadd.f32 %v991, %v1071
      %v1116 = vadd.f32 %v992, %v1074
      %v1117 = vadd.f32 %v993, %v1076
      %v1118 = vadd.f32 %v994, %v1079
      %v1119 = vadd.f32 %v995, %v1081
      %v1120 = vadd.f32 %v996, %v1084
      %v1121 = vadd.f32 %v997, %v1086
      %v1122 = vadd.f32 %v998, %v1089
      %v1123 = vadd.f32 %v999, %v1091
      %v1124 = vld [vmem:[%s2] sm:$0x1]
      %v1126 = vlaneseq
      %v1127 = vshrl.u32 %v1126, 7
      %v1128 = vsub.s32 0, %v1127
      %v1129 = vrot.slane %v1124, %v1128
      %v1131 = vadd.f32 %v1108, %v1129
      %v1132 = vadd.f32 %v1109, %v1129
      %v1133 = vadd.f32 %v1110, %v1129
      %v1134 = vadd.f32 %v1111, %v1129
      %v1135 = vadd.f32 %v1112, %v1129
      %v1136 = vadd.f32 %v1113, %v1129
      %v1137 = vadd.f32 %v1114, %v1129
      %v1138 = vadd.f32 %v1115, %v1129
      %v1139 = vadd.f32 %v1116, %v1129
      %v1140 = vadd.f32 %v1117, %v1129
      %v1141 = vadd.f32 %v1118, %v1129
      %v1142 = vadd.f32 %v1119, %v1129
      %v1143 = vadd.f32 %v1120, %v1129
      %v1144 = vadd.f32 %v1121, %v1129
      %v1145 = vadd.f32 %v1122, %v1129
      %v1146 = vadd.f32 %v1123, %v1129
      %v1147 = vmax.f32 %v1131, 0.0
      %v1148 = vmax.f32 %v1132, 0.0
      %v1149 = vmax.f32 %v1133, 0.0
      %v1150 = vmax.f32 %v1134, 0.0
      %v1151 = vmax.f32 %v1135, 0.0
      %v1152 = vmax.f32 %v1136, 0.0
      %v1153 = vmax.f32 %v1137, 0.0
      %v1154 = vmax.f32 %v1138, 0.0
      %v1155 = vmax.f32 %v1139, 0.0
      %v1156 = vmax.f32 %v1140, 0.0
      %v1157 = vmax.f32 %v1141, 0.0
      %v1158 = vmax.f32 %v1142, 0.0
      %v1159 = vmax.f32 %v1143, 0.0
      %v1160 = vmax.f32 %v1144, 0.0
      %v1161 = vmax.f32 %v1145, 0.0
      %v1162 = vmax.f32 %v1146, 0.0
      %v1163 = vpack.c.bf16 %v1148, %v1147
      %v1164 = vpack.c.bf16 %v1150, %v1149
      %v1165 = vpack.c.bf16 %v1152, %v1151
      %v1166 = vpack.c.bf16 %v1154, %v1153
      %v1167 = vpack.c.bf16 %v1156, %v1155
      %v1168 = vpack.c.bf16 %v1158, %v1157
      %v1169 = vpack.c.bf16 %v1160, %v1159
      %v1170 = vpack.c.bf16 %v1162, %v1161
      %v1171 = vld [vmem:[%s3] sm:$0xf]
      %v1172 = vld [vmem:[%s3 + $0x4] sm:$0xf]
      %v1173 = vld [vmem:[%s3 + $0x8] sm:$0xf]
      %v1174 = vld [vmem:[%s3 + $0xc] sm:$0xf]
      %v1175 = vld [vmem:[%s3 + $0x10] sm:$0xf]
      %v1176 = vld [vmem:[%s3 + $0x14] sm:$0xf]
      %v1177 = vld [vmem:[%s3 + $0x18] sm:$0xf]
      %v1178 = vld [vmem:[%s3 + $0x1c] sm:$0xf]
      %v1179 = vld [vmem:[%s3 + $0x20] sm:$0xf]
      %v1180 = vld [vmem:[%s3 + $0x24] sm:$0xf]
      %v1181 = vld [vmem:[%s3 + $0x28] sm:$0xf]
      %v1182 = vld [vmem:[%s3 + $0x2c] sm:$0xf]
      %v1183 = vld [vmem:[%s3 + $0x30] sm:$0xf]
      %v1184 = vld [vmem:[%s3 + $0x34] sm:$0xf]
      %v1185 = vld [vmem:[%s3 + $0x38] sm:$0xf]
      %v1186 = vld [vmem:[%s3 + $0x3c] sm:$0xf]
      %v1187 = vld [vmem:[%s4] sm:$0x1]
      %v1189 = vlaneseq
      %v1190 = vshrl.u32 %v1189, 7
      %v1191 = vsub.s32 0, %v1190
      %v1192 = vrot.slane %v1187, %v1191
      %v1210 = vunpack.c.l.b16 %v1171
      %v1211 = vunpack.c.l.b16 %v1172
      %v1212 = vunpack.c.l.b16 %v1173
      %v1213 = vunpack.c.l.b16 %v1174
      %v1214 = vunpack.c.l.b16 %v1175
      %v1215 = vunpack.c.l.b16 %v1176
      %v1216 = vunpack.c.l.b16 %v1177
      %v1217 = vunpack.c.l.b16 %v1178
      %v1218 = vunpack.c.l.b16 %v1179
      %v1219 = vunpack.c.l.b16 %v1180
      %v1220 = vunpack.c.l.b16 %v1181
      %v1221 = vunpack.c.l.b16 %v1182
      %v1222 = vunpack.c.l.b16 %v1183
      %v1223 = vunpack.c.l.b16 %v1184
      %v1224 = vunpack.c.l.b16 %v1185
      %v1225 = vunpack.c.l.b16 %v1186
      %v1226 = vpack.c.b16 %v1211, %v1210
      %v1227 = vpack.c.b16 %v1213, %v1212
      %v1228 = vpack.c.b16 %v1215, %v1214
      %v1229 = vpack.c.b16 %v1217, %v1216
      %v1230 = vpack.c.b16 %v1219, %v1218
      %v1231 = vpack.c.b16 %v1221, %v1220
      %v1232 = vpack.c.b16 %v1223, %v1222
      %v1233 = vpack.c.b16 %v1225, %v1224
      %1242 = vmatprep.subr.bf16.mxu0 0
      %1243 = vmatpush1.bf16.msra.mxu0 %v1226
      %1244 = vmatprep.subr.bf16.mxu0 0
      %1245 = vmatpush1.bf16.msra.mxu0 %v1227
      %1246 = vmatprep.subr.bf16.mxu0 0
      %1247 = vmatpush1.bf16.msra.mxu0 %v1228
      %1248 = vmatprep.subr.bf16.mxu0 0
      %1249 = vmatpush1.bf16.msra.mxu0 %v1229
      %1250 = vmatprep.subr.bf16.mxu0 0
      %1251 = vmatpush1.bf16.msra.mxu0 %v1230
      %1252 = vmatprep.subr.bf16.mxu0 0
      %1253 = vmatpush1.bf16.msra.mxu0 %v1231
      %1254 = vmatprep.subr.bf16.mxu0 0
      %1255 = vmatpush1.bf16.msra.mxu0 %v1232
      %1256 = vmatprep.subr.bf16.mxu0 0
      %1257 = vmatpush1.bf16.msra.mxu0 %v1233
      %1258 = vmatprep.subr.bf16.mxu0 0
      %1259 = vmatpush1.bf16.msra.mxu0 0
      %1260 = vmatprep.subr.bf16.mxu0 0
      %1261 = vmatpush1.bf16.msra.mxu0 0
      %1262 = vmatprep.subr.bf16.mxu0 0
      %1263 = vmatpush1.bf16.msra.mxu0 0
      %1264 = vmatprep.subr.bf16.mxu0 0
      %1265 = vmatpush1.bf16.msra.mxu0 0
      %1266 = vmatprep.subr.bf16.mxu0 0
      %1267 = vmatpush1.bf16.msra.mxu0 0
      %1268 = vmatprep.subr.bf16.mxu0 0
      %1269 = vmatpush1.bf16.msra.mxu0 0
      %1270 = vmatprep.subr.bf16.mxu0 0
      %1271 = vmatpush1.bf16.msra.mxu0 0
      %1272 = vmatprep.subr.bf16.mxu0 0
      %1273 = vmatpush1.bf16.msra.mxu0 0
      %1274 = vmatprep.mubr.bf16.mxu0 0
      %1275 = vmatmul.mubr.bf16.gmra.mrb[0].mxu0 %v1163
      %v1276 = vpop.f32.mrb[0].mxu0
      %v1277 = vadd.f32 %v1192, %v1276
      %v1278 = vpop.f32.mrb[0].mxu0
      %v1279 = vpop.f32.mrb[0].mxu0
      %v1280 = vadd.f32 %v1192, %v1279
      %v1281 = vpop.f32.mrb[0].mxu0
      %1282 = vmatprep.mubr.bf16.mxu0 0
      %1283 = vmatmul.mubr.bf16.gmra.mrb[0].mxu0 %v1164
      %v1284 = vpop.f32.mrb[0].mxu0
      %v1285 = vadd.f32 %v1192, %v1284
      %v1286 = vpop.f32.mrb[0].mxu0
      %v1287 = vpop.f32.mrb[0].mxu0
      %v1288 = vadd.f32 %v1192, %v1287
      %v1289 = vpop.f32.mrb[0].mxu0
      %1290 = vmatprep.mubr.bf16.mxu0 0
      %1291 = vmatmul.mubr.bf16.gmra.mrb[0].mxu0 %v1165
      %v1292 = vpop.f32.mrb[0].mxu0
      %v1293 = vadd.f32 %v1192, %v1292
      %v1294 = vpop.f32.mrb[0].mxu0
      %v1295 = vpop.f32.mrb[0].mxu0
      %v1296 = vadd.f32 %v1192, %v1295
      %v1297 = vpop.f32.mrb[0].mxu0
      %1298 = vmatprep.mubr.bf16.mxu0 0
      %1299 = vmatmul.mubr.bf16.gmra.mrb[0].mxu0 %v1166
      %v1300 = vpop.f32.mrb[0].mxu0
      %v1301 = vadd.f32 %v1192, %v1300
      %v1302 = vpop.f32.mrb[0].mxu0
      %v1303 = vpop.f32.mrb[0].mxu0
      %v1304 = vadd.f32 %v1192, %v1303
      %v1305 = vpop.f32.mrb[0].mxu0
      %1306 = vmatprep.mubr.bf16.mxu0 0
      %1307 = vmatmul.mubr.bf16.gmra.mrb[0].mxu0 %v1167
      %v1308 = vpop.f32.mrb[0].mxu0
      %v1309 = vadd.f32 %v1192, %v1308
      %v1310 = vpop.f32.mrb[0].mxu0
      %v1311 = vpop.f32.mrb[0].mxu0
      %v1312 = vadd.f32 %v1192, %v1311
      %v1313 = vpop.f32.mrb[0].mxu0
      %1314 = vmatprep.mubr.bf16.mxu0 0
      %1315 = vmatmul.mubr.bf16.gmra.mrb[0].mxu0 %v1168
      %v1316 = vpop.f32.mrb[0].mxu0
      %v1317 = vadd.f32 %v1192, %v1316
      %v1318 = vpop.f32.mrb[0].mxu0
      %v1319 = vpop.f32.mrb[0].mxu0
      %v1320 = vadd.f32 %v1192, %v1319
      %v1321 = vpop.f32.mrb[0].mxu0
      %1322 = vmatprep.mubr.bf16.mxu0 0
      %1323 = vmatmul.mubr.bf16.gmra.mrb[0].mxu0 %v1169
      %v1324 = vpop.f32.mrb[0].mxu0
      %v1325 = vadd.f32 %v1192, %v1324
      %v1326 = vpop.f32.mrb[0].mxu0
      %v1327 = vpop.f32.mrb[0].mxu0
      %v1328 = vadd.f32 %v1192, %v1327
      %v1329 = vpop.f32.mrb[0].mxu0
      %1330 = vmatprep.mubr.bf16.mxu0 0
      %1331 = vmatmul.mubr.bf16.gmra.mrb[0].mxu0 %v1170
      %v1332 = vpop.f32.mrb[0].mxu0
      %v1333 = vadd.f32 %v1192, %v1332
      %v1334 = vpop.f32.mrb[0].mxu0
      %v1335 = vpop.f32.mrb[0].mxu0
      %v1336 = vadd.f32 %v1192, %v1335
      %v1337 = vpop.f32.mrb[0].mxu0
      %1338 = vdwg.mxu0
      %v1339 = vmax.f32 %v1277, 0.0
      %v1340 = vmax.f32 %v1280, 0.0
      %v1341 = vmax.f32 %v1285, 0.0
      %v1342 = vmax.f32 %v1288, 0.0
      %v1343 = vmax.f32 %v1293, 0.0
      %v1344 = vmax.f32 %v1296, 0.0
      %v1345 = vmax.f32 %v1301, 0.0
      %v1346 = vmax.f32 %v1304, 0.0
      %v1347 = vmax.f32 %v1309, 0.0
      %v1348 = vmax.f32 %v1312, 0.0
      %v1349 = vmax.f32 %v1317, 0.0
      %v1350 = vmax.f32 %v1320, 0.0
      %v1351 = vmax.f32 %v1325, 0.0
      %v1352 = vmax.f32 %v1328, 0.0
      %v1353 = vmax.f32 %v1333, 0.0
      %v1354 = vmax.f32 %v1336, 0.0
      %1355 = vst [vmem:[%s248] sm:$0xff] %v1339
      %1356 = vst [vmem:[%s248 + $0x8] sm:$0xff] %v1340
      %1357 = vst [vmem:[%s248 + $0x10] sm:$0xff] %v1341
      %1358 = vst [vmem:[%s248 + $0x18] sm:$0xff] %v1342
      %1359 = vst [vmem:[%s248 + $0x20] sm:$0xff] %v1343
      %1360 = vst [vmem:[%s248 + $0x28] sm:$0xff] %v1344
      %1361 = vst [vmem:[%s248 + $0x30] sm:$0xff] %v1345
      %1362 = vst [vmem:[%s248 + $0x38] sm:$0xff] %v1346
      %1363 = vst [vmem:[%s248 + $0x40] sm:$0xff] %v1347
      %1364 = vst [vmem:[%s248 + $0x48] sm:$0xff] %v1348
      %1365 = vst [vmem:[%s248 + $0x50] sm:$0xff] %v1349
      %1366 = vst [vmem:[%s248 + $0x58] sm:$0xff] %v1350
      %1367 = vst [vmem:[%s248 + $0x60] sm:$0xff] %v1351
      %1368 = vst [vmem:[%s248 + $0x68] sm:$0xff] %v1352
      %1369 = vst [vmem:[%s248 + $0x70] sm:$0xff] %v1353
      %1370 = vst [vmem:[%s248 + $0x78] sm:$0xff] %v1354
      %s1371 = smul.u32 8, %s21
      %p1372 = scmp.lt.s32.totalorder %s20, 1
      %s1373 = scalar_select %p1372, %s20, 1
      %p1374 = scmp.lt.s32.totalorder %s1371, 15
      %s1375 = scalar_select %p1374, %s1371, 15
      %s1376 = smul.addr %s1375, 2
      %s1377 = smul.addr %s1373, 32
      %s1378 = sadd.s32 %s1376, %s1377
      %s1379 = smul.addr %s1378, 8
      %s1380 = scalar_lea.vmem %s5, %s1379
      // Predicated region
      $region41: #{mobilenet_block.1} parent=39 // pred_check
        %p1381 = pneg %p158
      $region42: #{mobilenet_block.1} parent=39 // pred_check_branch
        %1383 = sbr.rel (%p1381) target = $region44
      $region43: #{mobilenet_block.1} parent=39 // pred_region
        %s1384 = smul.u32 8, %s21
      $region44: #{mobilenet_block.1} parent=39 // pred_fallthru
        _
    $region40: #{mobilenet_block.1} parent=5 // pred_fallthru
      _
    %p1385 = scmp.le.s32.totalorder 2, %s11
    // Predicated region
    $region45: #{mobilenet_block.1} parent=5 // pred_check
      %p1386 = pneg %p1385
    $region46: #{mobilenet_block.1} parent=5 // pred_check_branch
      %1388 = sbr.rel (%p1386) target = $region48
    $region47: #{mobilenet_block.1} parent=5 // pred_region
      %s1389 = ssub.s32 %s11, 2
      // Predicated region
      $region49: #{mobilenet_block.1} parent=47 // pred_check
        %p1390 = pneg %p164
      $region50: #{mobilenet_block.1} parent=47 // pred_check_branch
        %1392 = sbr.rel (%p1390) target = $region52
      $region51: #{mobilenet_block.1} parent=47 // pred_region
        %s1393 = smul.u32 8, %s23
        %p1394 = scmp.lt.s32.totalorder %s22, 1
        %s1395 = scalar_select %p1394, %s22, 1
        %p1396 = scmp.lt.s32.totalorder %s1393, 15
        %s1397 = scalar_select %p1396, %s1393, 15
        %s1398 = smul.addr %s1397, 2
        %s1399 = smul.addr %s1395, 32
        %s1400 = sadd.s32 %s1398, %s1399
        %s1401 = smul.addr %s1400, 8
        %s1402 = scalar_lea.vmem %s5, %s1401
      $region52: #{mobilenet_block.1} parent=47 // pred_fallthru
        _
    $region48: #{mobilenet_block.1} parent=5 // pred_fallthru
      _
  $region6: #{mobilenet_block.1} parent=0 // loop_footer
    %s15 = sadd.s32 1, %s11
  $region7: #{mobilenet_block.1} parent=0 // loop_footer_branch
    %10 = sbr.rel target = $region3
  $region8: #{mobilenet_block.1} parent=0 // loop_exit
    _

</llo_original>
